<compile_context>
chip_gen: v7x
topology: tpu7x:2x2x1
jax: 0.10.0
libtpu: 0.0.40
codegen_flags: <defaults>
</compile_context>

<pallas_src>
import functools

import jax
import jax.numpy as jnp
from jax import lax
from jax.experimental import pallas as pl
from jax.experimental.pallas import tpu as pltpu


_GAMMA = 1.5
_EPS = 1e-5


def _nr_dice_kernel(p_ref, y_ref, out_ref, acc_num, acc_den, *,
                    n_pixels, tile, n_channels, needs_mask):
    # p_ref, y_ref : (C, TILE) blocks of predict / soft_y (native dtype)
    # out_ref      : (2, C) per-sample [numer_sum; denom_sum], written on last tile
    # acc_num/den  : (C, TILE) f32 VMEM lane-wise accumulators (persist over tiles)
    i = pl.program_id(1)

    @pl.when(i == 0)
    def _():
        acc_num[...] = jnp.zeros_like(acc_num)
        acc_den[...] = jnp.zeros_like(acc_den)

    p = p_ref[...].astype(jnp.float32)
    y = y_ref[...].astype(jnp.float32)

    d = jnp.abs(p - y)
    num_c = d * jnp.sqrt(d)          # |p - y| ** 1.5  (gamma = 1.5)
    den_c = p + y

    if needs_mask:
        # Last block may extend past the true pixel count; OOB lanes hold
        # unspecified data -> zero their contribution. Statically omitted when
        # TILE divides n_pixels. Compare/select rides in VALU slack.
        pos = i * tile + lax.broadcasted_iota(jnp.int32, (n_channels, tile), 1)
        valid = pos < n_pixels
        num_c = jnp.where(valid, num_c, 0.0)
        den_c = jnp.where(valid, den_c, 0.0)

    acc_num[...] += num_c
    acc_den[...] += den_c

    @pl.when(i == pl.num_programs(1) - 1)
    def _():
        out_ref[0, :] = jnp.sum(acc_num[...], axis=-1)
        out_ref[1, :] = jnp.sum(acc_den[...], axis=-1)


def noise_robust_dice_loss(predict, soft_y, *, tile_cap=32768,
                           vmem_budget_bytes=12 * 2**20):
    """predict / soft_y: (N, C, H, W) or (N, C, D, H, W) float tensors."""
    if isinstance(predict, (list, tuple)):
        predict = predict[0]
    N, C = predict.shape[0], predict.shape[1]

    # Free reshape (no data movement): flatten all spatial dims.
    p = predict.reshape(N, C, -1)
    y = soft_y.reshape(N, C, -1)
    P = p.shape[-1]

    # --- Tile selection -----------------------------------------------------
    # Conservative per-lane VMEM estimate (f32-equivalent, sublane-padded C):
    #   2 inputs x 2 pipeline buffers + 2 f32 accumulators.
    c_pad = ((C + 7) // 8) * 8
    bytes_per_lane = (2 * 2 + 2) * c_pad * 4
    cap = max(512, (vmem_budget_bytes // bytes_per_lane) // 128 * 128)
    cap = min(int(tile_cap), cap)

    if P <= cap:
        tile = P                      # single block == full dim: always legal
        num_tiles = 1
        needs_mask = False
    else:
        tile = cap                    # multiple of 128
        num_tiles = (P + tile - 1) // tile
        needs_mask = (P % tile) != 0  # mask ragged tail in-kernel (no jnp.pad)

    kernel = functools.partial(
        _nr_dice_kernel,
        n_pixels=P, tile=tile, n_channels=C, needs_mask=needs_mask)

    partials = pl.pallas_call(
        kernel,
        out_shape=jax.ShapeDtypeStruct((N, 2, C), jnp.float32),
        grid_spec=pltpu.PrefetchScalarGridSpec(
            num_scalar_prefetch=0,
            grid=(N, num_tiles),
            in_specs=[
                pl.BlockSpec((None, C, tile), lambda n, i: (n, 0, i)),
                pl.BlockSpec((None, C, tile), lambda n, i: (n, 0, i)),
            ],
            out_specs=pl.BlockSpec((None, 2, C), lambda n, i: (n, 0, 0)),
            scratch_shapes=[
                pltpu.VMEM((C, tile), jnp.float32),
                pltpu.VMEM((C, tile), jnp.float32),
            ],
        ),
        compiler_params=pltpu.CompilerParams(
            dimension_semantics=("parallel", "arbitrary"),
        ),
    )(p, y)

    numer_sum = jnp.sum(partials[:, 0, :], axis=0)      # (C,)
    denom_sum = jnp.sum(partials[:, 1, :], axis=0)      # (C,)
    loss_vector = numer_sum / (denom_sum + _EPS)
    return jnp.mean(loss_vector)


def _reference(predict, soft_y, gamma=_GAMMA):
    # Pure-JAX mirror of the PyTorch module (reshape_tensor_to_2D + forward).
    C = predict.shape[1]
    p = jnp.moveaxis(predict, 1, -1).reshape(-1, C).astype(jnp.float32)
    y = jnp.moveaxis(soft_y, 1, -1).reshape(-1, C).astype(jnp.float32)
    numer_sum = jnp.sum(jnp.abs(p - y) ** gamma, axis=0)
    denom_sum = jnp.sum(p + y, axis=0)
    return jnp.mean(numer_sum / (denom_sum + 1e-5))


def _make_inputs(key, N, C, *spatial):
    k1, k2 = jax.random.split(key)
    logits = jax.random.normal(k1, (N, C, *spatial), dtype=jnp.float32)
    predict = jax.nn.softmax(logits, axis=1)                        # probabilities
    labels = jax.random.randint(k2, (N, *spatial), 0, C, dtype=jnp.int32)
    soft_y = jax.nn.one_hot(labels, C, axis=1, dtype=jnp.float32)   # (N, C, ...)
    return predict, soft_y


if __name__ == "__main__":
    key = jax.random.PRNGKey(0)
    ka, kb = jax.random.split(key)

    # Case 1: standard small 4-D shape (single-tile path).
    predict, soft_y = _make_inputs(ka, 2, 4, 16, 16)
    loss = jax.block_until_ready(noise_robust_dice_loss(predict, soft_y))
    ref = _reference(predict, soft_y)
    assert jnp.allclose(loss, ref, rtol=1e-4, atol=1e-6), (loss, ref)

    # Case 2: ragged pixel count with forced tiling (exercises the masked
    # multi-tile path without any wrapper-side padding).
    predict2, soft_y2 = _make_inputs(kb, 2, 4, 10, 20)   # P = 200, tile = 128
    loss2 = jax.block_until_ready(
        noise_robust_dice_loss(predict2, soft_y2, tile_cap=128))
    ref2 = _reference(predict2, soft_y2)
    assert jnp.allclose(loss2, ref2, rtol=1e-4, atol=1e-6), (loss2, ref2)

    print("KERNEL_OK")
</pallas_src>

<mosaic_0001>
module attributes {stable_mosaic.version = 11 : i64} {
  func.func @_nr_dice_kernel(%arg0: i32, %arg1: i32, %arg2: memref<1x4x256xf32, #tpu.memory_space<vmem>>, %arg3: memref<1x4x256xf32, #tpu.memory_space<vmem>>, %arg4: memref<1x2x4xf32, #tpu.memory_space<vmem>>, %arg5: memref<4x256xf32, #tpu.memory_space<vmem>>, %arg6: memref<4x256xf32, #tpu.memory_space<vmem>>) attributes {dimension_semantics = [#tpu.dimension_semantics<parallel>, #tpu.dimension_semantics<arbitrary>], iteration_bounds = array<i64: 2, 1>, scalar_prefetch = 0 : i64, scratch_operands = 2 : i64, tpu.core_type = #tpu.core_type<tc>, window_params = [{transform_indices = @transform_0, window_bounds = array<i64: 1, 4, 256>}, {transform_indices = @transform_1, window_bounds = array<i64: 1, 4, 256>}, {transform_indices = @transform_2, window_bounds = array<i64: 1, 2, 4>}]} {
    %c0_i32 = arith.constant 0 : i32
    %0 = arith.cmpi eq, %arg1, %c0_i32 : i32
    %1 = arith.extui %0 : i1 to i32
    %c0_i32_0 = arith.constant 0 : i32
    %2 = arith.cmpi ne, %1, %c0_i32_0 : i32
    scf.if %2 {
      %cst = arith.constant 0.000000e+00 : f32
      %21 = vector.broadcast %cst : f32 to vector<4x256xf32>
      %c0_16 = arith.constant 0 : index
      %c0_17 = arith.constant 0 : index
      %22 = vector.load %arg5[%c0_16, %c0_17] : memref<4x256xf32, #tpu.memory_space<vmem>>, vector<4x256xf32>
      tpu.vector_store %arg5[%c0_16, %c0_17], %21 {strides = array<i32>} : memref<4x256xf32, #tpu.memory_space<vmem>>, vector<4x256xf32>,
      %cst_18 = arith.constant 0.000000e+00 : f32
      %23 = vector.broadcast %cst_18 : f32 to vector<4x256xf32>
      %c0_19 = arith.constant 0 : index
      %c0_20 = arith.constant 0 : index
      %24 = vector.load %arg6[%c0_19, %c0_20] : memref<4x256xf32, #tpu.memory_space<vmem>>, vector<4x256xf32>
      tpu.vector_store %arg6[%c0_19, %c0_20], %23 {strides = array<i32>} : memref<4x256xf32, #tpu.memory_space<vmem>>, vector<4x256xf32>,
    } else {
    }
    %c0 = arith.constant 0 : index
    %c0_1 = arith.constant 0 : index
    %c0_2 = arith.constant 0 : index
    %3 = vector.load %arg2[%c0, %c0_1, %c0_2] : memref<1x4x256xf32, #tpu.memory_space<vmem>>, vector<1x4x256xf32>
    %4 = vector.shape_cast %3 : vector<1x4x256xf32> to vector<4x256xf32>
    %c0_3 = arith.constant 0 : index
    %c0_4 = arith.constant 0 : index
    %c0_5 = arith.constant 0 : index
    %5 = vector.load %arg3[%c0_3, %c0_4, %c0_5] : memref<1x4x256xf32, #tpu.memory_space<vmem>>, vector<1x4x256xf32>
    %6 = vector.shape_cast %5 : vector<1x4x256xf32> to vector<4x256xf32>
    %7 = arith.subf %4, %6 : vector<4x256xf32>
    %8 = math.absf %7 : vector<4x256xf32>
    %9 = math.sqrt %8 : vector<4x256xf32>
    %10 = arith.mulf %8, %9 : vector<4x256xf32>
    %11 = arith.addf %4, %6 : vector<4x256xf32>
    %c0_6 = arith.constant 0 : index
    %c0_7 = arith.constant 0 : index
    %12 = vector.load %arg5[%c0_6, %c0_7] : memref<4x256xf32, #tpu.memory_space<vmem>>, vector<4x256xf32>
    %13 = arith.addf %12, %10 : vector<4x256xf32>
    %c0_8 = arith.constant 0 : index
    %c0_9 = arith.constant 0 : index
    %14 = vector.load %arg5[%c0_8, %c0_9] : memref<4x256xf32, #tpu.memory_space<vmem>>, vector<4x256xf32>
    tpu.vector_store %arg5[%c0_8, %c0_9], %13 {strides = array<i32>} : memref<4x256xf32, #tpu.memory_space<vmem>>, vector<4x256xf32>,
    %c0_10 = arith.constant 0 : index
    %c0_11 = arith.constant 0 : index
    %15 = vector.load %arg6[%c0_10, %c0_11] : memref<4x256xf32, #tpu.memory_space<vmem>>, vector<4x256xf32>
    %16 = arith.addf %15, %11 : vector<4x256xf32>
    %c0_12 = arith.constant 0 : index
    %c0_13 = arith.constant 0 : index
    %17 = vector.load %arg6[%c0_12, %c0_13] : memref<4x256xf32, #tpu.memory_space<vmem>>, vector<4x256xf32>
    tpu.vector_store %arg6[%c0_12, %c0_13], %16 {strides = array<i32>} : memref<4x256xf32, #tpu.memory_space<vmem>>, vector<4x256xf32>,
    %c0_i32_14 = arith.constant 0 : i32
    %18 = arith.cmpi eq, %arg1, %c0_i32_14 : i32
    %19 = arith.extui %18 : i1 to i32
    %c0_i32_15 = arith.constant 0 : i32
    %20 = arith.cmpi ne, %19, %c0_i32_15 : i32
    scf.if %20 {
      %c0_16 = arith.constant 0 : index
      %c0_17 = arith.constant 0 : index
      %21 = vector.load %arg5[%c0_16, %c0_17] : memref<4x256xf32, #tpu.memory_space<vmem>>, vector<4x256xf32>
      %cst = arith.constant dense<0.000000e+00> : vector<4xf32>
      %22 = vector.multi_reduction <add>, %21, %cst [1] : vector<4x256xf32> to vector<4xf32>
      %c0_18 = arith.constant 0 : index
      %c0_19 = arith.constant 0 : index
      %c0_20 = arith.constant 0 : index
      %23 = vector.load %arg4[%c0_18, %c0_19, %c0_20] : memref<1x2x4xf32, #tpu.memory_space<vmem>>, vector<1x1x4xf32>
      %24 = vector.shape_cast %23 : vector<1x1x4xf32> to vector<4xf32>
      %25 = vector.shape_cast %22 : vector<4xf32> to vector<1x1x4xf32>
      tpu.vector_store %arg4[%c0_18, %c0_19, %c0_20], %25 {strides = array<i32>} : memref<1x2x4xf32, #tpu.memory_space<vmem>>, vector<1x1x4xf32>,
      %c0_21 = arith.constant 0 : index
      %c0_22 = arith.constant 0 : index
      %26 = vector.load %arg6[%c0_21, %c0_22] : memref<4x256xf32, #tpu.memory_space<vmem>>, vector<4x256xf32>
      %cst_23 = arith.constant dense<0.000000e+00> : vector<4xf32>
      %27 = vector.multi_reduction <add>, %26, %cst_23 [1] : vector<4x256xf32> to vector<4xf32>
      %c0_24 = arith.constant 0 : index
      %c1 = arith.constant 1 : index
      %c0_25 = arith.constant 0 : index
      %28 = vector.load %arg4[%c0_24, %c1, %c0_25] : memref<1x2x4xf32, #tpu.memory_space<vmem>>, vector<1x1x4xf32>
      %29 = vector.shape_cast %28 : vector<1x1x4xf32> to vector<4xf32>
      %30 = vector.shape_cast %27 : vector<4xf32> to vector<1x1x4xf32>
      tpu.vector_store %arg4[%c0_24, %c1, %c0_25], %30 {strides = array<i32>} : memref<1x2x4xf32, #tpu.memory_space<vmem>>, vector<1x1x4xf32>,
    } else {
    }
    return
  }
  func.func @transform_0(%arg0: i32, %arg1: i32) -> (i32, i32, i32) {
    %c0_i32 = arith.constant 0 : i32
    %c0_i32_0 = arith.constant 0 : i32
    return %arg0, %c0_i32, %arg1 : i32, i32, i32
  }
  func.func @transform_1(%arg0: i32, %arg1: i32) -> (i32, i32, i32) {
    %c0_i32 = arith.constant 0 : i32
    %c0_i32_0 = arith.constant 0 : i32
    return %arg0, %c0_i32, %arg1 : i32, i32, i32
  }
  func.func @transform_2(%arg0: i32, %arg1: i32) -> (i32, i32, i32) {
    %c0_i32 = arith.constant 0 : i32
    %c0_i32_0 = arith.constant 0 : i32
    %c0_i32_1 = arith.constant 0 : i32
    return %arg0, %c0_i32, %c0_i32_0 : i32, i32, i32
  }
}

</mosaic_0001>

<llo_original>
// kernel: tpu_custom_call.1
$region0: #{tpu_custom_call.1}
  #allocation0 [shape = 'u32[]', space=smem, size = 0x4, offset = 0x4, fixed_abs, tag = 'smem constant byte address 0x4 - core index']
  #allocation1 [shape = 'u32[144,128]{1,0:T(1,128)}', space=vmem, size = 0x12000, scoped, tag = 'internal scratch']
  #allocation2 [shape = 'f32[4,256]{1,0:T(4,128)}', space=vmem, size = 0x1000, scoped, tag = 'scratch operand']
  #allocation3 [shape = 'f32[4,256]{1,0:T(4,128)}', space=vmem, size = 0x1000, scoped, tag = 'scratch operand']
  %s0 = inlined_call_operand.hbm [shape: f32[2,4,256], index: 0, kind: input, shape index: {}]
  %s1 = inlined_call_operand.hbm [shape: f32[2,4,256], index: 1, kind: input, shape index: {}]
  %s2 = inlined_call_operand.hbm [shape: f32[2,2,4], index: 2, kind: output, shape index: {}]
  %s3 = sld [smem:[#allocation0]]
  $region57: #{tpu_custom_call.1} parent=0
    _
  %s5 = ssub.s32 1, %s3
  %s6 = scalar_select 0, %s5, %s3
  $region1: #{tpu_custom_call.1} parent=0
    #allocation4 [shape = 'u8[8192]{0}', space=vmem, size = 0x2000, scoped, tag = 'input window, operand 0']
    #allocation5 [shape = 's32[2]{0}', space=sflag, size = 0x8, scoped, tag = 'scoped memory for tpu_custom_call.1']
    #allocation6 [shape = 's32[2]{0}', space=sflag, size = 0x8, scoped, tag = 'scoped memory for tpu_custom_call.1']
    #allocation7 [shape = 'u8[8192]{0}', space=vmem, size = 0x2000, scoped, tag = 'input window, operand 1']
    #allocation8 [shape = 's32[2]{0}', space=sflag, size = 0x8, scoped, tag = 'scoped memory for tpu_custom_call.1']
    #allocation9 [shape = 'u8[2048]{0}', space=vmem, size = 0x800, scoped, tag = 'output window, operand 0']
    %7 = vsyncpa [#allocation5], 0
    %s8 = scalar_lea.sflag [#allocation5], 1
    %9 = vsyncpa %s8, 0
    %10 = vsyncpa [#allocation8], 0
    %s11 = scalar_lea.sflag [#allocation8], 1
    %12 = vsyncpa %s11, 0
    %13 = vsyncpa [#allocation6], 0
    %s14 = scalar_lea.sflag [#allocation6], 1
    %15 = vsyncpa %s14, 0
    loop: start=0, step=1, limit=4
    $region2: #{tpu_custom_call.1} parent=1 // loop_pre_header
      _
    $region3: #{tpu_custom_call.1} parent=1 // loop_header
      %s17 = sphi 0, %s21
      %p18 = scmp.ge.s32.totalorder %s17, 4
      %s24 = sphi 0, %s36
      %s25 = sphi 0, %s32
      %s26 = sphi 0, %s24
      %s27 = sphi 0, %s25
      %s28 = sphi 0, %s26
      %s29 = sphi 0, %s27
      %s41 = sphi 0, %s43
      %s44 = sphi 0, %s41
      %s45 = sphi 0, %s44
      %s61 = sphi 0, %s45
      %s69 = sphi 0, %s71
      %s72 = sphi 0, %s69
      %s73 = sphi 0, %s72
      %s89 = sphi 0, %s73
      %s95 = sphi 0, %s97
      %s98 = sphi 0, %s95
      %s99 = sphi 0, %s98
      %s115 = sphi 0, %s99
    $region4: #{tpu_custom_call.1} parent=1 // loop_header_branch
      %20 = sbr.rel (%p18) target = $region8
    $region5: #{tpu_custom_call.1} parent=1 // loop_body
      %s22 = ssub.s32 %s17, 1
      %s23 = ssub.s32 %s17, 2
      %s30 = sadd.s32 1, %s25
      %p31 = scmp.ge.s32.totalorder %s30, 1
      %s32 = scalar_select %p31, 0, %s30
      %s33 = sadd.s32 1, %s24
      %s34 = scalar_select %p31, %s33, %s24
      %p35 = scmp.ge.s32.totalorder %s34, 2
      %s36 = scalar_select %p35, 0, %s34
      %s37 = ssub.s32 %s24, %s36
      %s38 = ssub.s32 %s25, %s32
      %s39 = sor.u32 %s37, %s38
      %p40 = scmp.eq.s32.totalorder %s39, 0
      %s42 = sadd.s32 %s41, 1
      %s43 = scalar_select %p40, %s41, %s42
      %p46 = pneg %p40
      %p47 = scmp.eq.s32.totalorder %s17, 1
      %p48 = por %p46, %p47
      %p49 = scmp.ne.s32.totalorder %s41, %s44
      %p50 = scmp.eq.s32.totalorder %s17, 0
      %p51 = por %p49, %p50
      %p52 = scmp.ne.s32.totalorder %s41, %s44
      %p53 = scmp.eq.s32.totalorder %s22, 1
      %p54 = por %p52, %p53
      %p55 = scmp.ne.s32.totalorder %s44, %s45
      %p56 = scmp.eq.s32.totalorder %s22, 0
      %p57 = por %p55, %p56
      %p58 = scmp.ne.s32.totalorder %s44, %s45
      %p59 = scmp.eq.s32.totalorder %s23, 1
      %p60 = por %p58, %p59
      %p62 = scmp.ne.s32.totalorder %s45, %s61
      %p63 = scmp.eq.s32.totalorder %s23, 0
      %p64 = por %p62, %p63
      %s65 = ssub.s32 %s24, %s36
      %s66 = ssub.s32 %s25, %s32
      %s67 = sor.u32 %s65, %s66
      %p68 = scmp.eq.s32.totalorder %s67, 0
      %s70 = sadd.s32 %s69, 1
      %s71 = scalar_select %p68, %s69, %s70
      %p74 = pneg %p68
      %p75 = scmp.eq.s32.totalorder %s17, 1
      %p76 = por %p74, %p75
      %p77 = scmp.ne.s32.totalorder %s69, %s72
      %p78 = scmp.eq.s32.totalorder %s17, 0
      %p79 = por %p77, %p78
      %p80 = scmp.ne.s32.totalorder %s69, %s72
      %p81 = scmp.eq.s32.totalorder %s22, 1
      %p82 = por %p80, %p81
      %p83 = scmp.ne.s32.totalorder %s72, %s73
      %p84 = scmp.eq.s32.totalorder %s22, 0
      %p85 = por %p83, %p84
      %p86 = scmp.ne.s32.totalorder %s72, %s73
      %p87 = scmp.eq.s32.totalorder %s23, 1
      %p88 = por %p86, %p87
      %p90 = scmp.ne.s32.totalorder %s73, %s89
      %p91 = scmp.eq.s32.totalorder %s23, 0
      %p92 = por %p90, %p91
      %s93 = ssub.s32 %s24, %s36
      %p94 = scmp.eq.s32.totalorder %s93, 0
      %s96 = sadd.s32 %s95, 1
      %s97 = scalar_select %p94, %s95, %s96
      %p100 = pneg %p94
      %p101 = scmp.eq.s32.totalorder %s17, 1
      %p102 = por %p100, %p101
      %p103 = scmp.ne.s32.totalorder %s95, %s98
      %p104 = scmp.eq.s32.totalorder %s17, 0
      %p105 = por %p103, %p104
      %p106 = scmp.ne.s32.totalorder %s95, %s98
      %p107 = scmp.eq.s32.totalorder %s22, 1
      %p108 = por %p106, %p107
      %p109 = scmp.ne.s32.totalorder %s98, %s99
      %p110 = scmp.eq.s32.totalorder %s22, 0
      %p111 = por %p109, %p110
      %p112 = scmp.ne.s32.totalorder %s98, %s99
      %p113 = scmp.eq.s32.totalorder %s23, 1
      %p114 = por %p112, %p113
      %p116 = scmp.ne.s32.totalorder %s99, %s115
      %p117 = scmp.eq.s32.totalorder %s23, 0
      %p118 = por %p116, %p117
      %p119 = scmp.le.s32.totalorder 1, %s17
      %p120 = scmp.lt.s32.totalorder %s17, 3
      %p121 = pnand %p119, %p120
      %p122 = pneg %p121
      // Predicated region
      $region9: #{tpu_custom_call.1} parent=5 // pred_check
        _
      $region10: #{tpu_custom_call.1} parent=5 // pred_check_branch
        %124 = sbr.rel (%p121) target = $region12
      $region11: #{tpu_custom_call.1} parent=5 // pred_region
        %s125 = ssub.s32 %s17, 1
      $region12: #{tpu_custom_call.1} parent=5 // pred_fallthru
        _
      %p126 = scmp.lt.s32.totalorder %s17, 2
      // Predicated region
      $region13: #{tpu_custom_call.1} parent=5 // pred_check
        %p127 = pneg %p126
      $region14: #{tpu_custom_call.1} parent=5 // pred_check_branch
        %129 = sbr.rel (%p127) target = $region16
      $region15: #{tpu_custom_call.1} parent=5 // pred_region
        // Predicated region
        $region17: #{tpu_custom_call.1} parent=15 // pred_check
          %p130 = pneg %p51
        $region18: #{tpu_custom_call.1} parent=15 // pred_check_branch
          %132 = sbr.rel (%p130) target = $region20
        $region19: #{tpu_custom_call.1} parent=15 // pred_region
          %s133 = sand.u32 %s41, 1
          %s134 = scalar_lea.sflag [#allocation5], %s133
          %s135 = sand.u32 %s41, 1
          %s136 = smul.addr %s135, 8
          %s137 = scalar_lea.vmem [#allocation4], %s136
          %s138 = smul.u32 2, %s25
          %s140 = ssub.s32 128, 128
          %141 = vsyncadd %s134, %s140
          %s142 = smul.addr %s24, 2
          %s143 = sadd.s32 %s138, %s142
          %s144 = smul.addr %s143, 64
          %s145 = scalar_lea.hbm %s0, %s144
          %s147 = sshll.u32 %s137, 4
          %s148 = int_to_ptr.vmem [resolvable:$true] %s147
          %150 = dma.hbm_to_vmem [thread:$0]  %s145, 128, %s148, %s134
        $region20: #{tpu_custom_call.1} parent=15 // pred_fallthru
          _
        // Predicated region
        $region21: #{tpu_custom_call.1} parent=15 // pred_check
          %p151 = pneg %p79
        $region22: #{tpu_custom_call.1} parent=15 // pred_check_branch
          %153 = sbr.rel (%p151) target = $region24
        $region23: #{tpu_custom_call.1} parent=15 // pred_region
          %s154 = sand.u32 %s69, 1
          %s155 = scalar_lea.sflag [#allocation8], %s154
          %s156 = sand.u32 %s69, 1
          %s157 = smul.addr %s156, 8
          %s158 = scalar_lea.vmem [#allocation7], %s157
          %s159 = smul.u32 2, %s25
          %s161 = ssub.s32 128, 128
          %162 = vsyncadd %s155, %s161
          %s163 = smul.addr %s24, 2
          %s164 = sadd.s32 %s159, %s163
          %s165 = smul.addr %s164, 64
          %s166 = scalar_lea.hbm %s1, %s165
          %s168 = sshll.u32 %s158, 4
          %s169 = int_to_ptr.vmem [resolvable:$true] %s168
          %171 = dma.hbm_to_vmem [thread:$0]  %s166, 128, %s169, %s155
        $region24: #{tpu_custom_call.1} parent=15 // pred_fallthru
          _
      $region16: #{tpu_custom_call.1} parent=5 // pred_fallthru
        _
      %p172 = scmp.le.s32.totalorder 1, %s17
      %p173 = scmp.lt.s32.totalorder %s17, 3
      %p174 = pnand %p172, %p173
      %p175 = pneg %p174
      // Predicated region
      $region25: #{tpu_custom_call.1} parent=5 // pred_check
        _
      $region26: #{tpu_custom_call.1} parent=5 // pred_check_branch
        %177 = sbr.rel (%p174) target = $region28
      $region27: #{tpu_custom_call.1} parent=5 // pred_region
        %s178 = ssub.s32 %s17, 1
        %s179 = sand.u32 %s44, 1
        %s180 = scalar_lea.sflag [#allocation5], %s179
        %s181 = sand.u32 %s44, 1
        %s182 = smul.addr %s181, 8
        %s183 = scalar_lea.vmem [#allocation4], %s182
        // Predicated region
        $region29: #{tpu_custom_call.1} parent=27 // pred_check
          %p184 = pneg %p57
        $region30: #{tpu_custom_call.1} parent=27 // pred_check_branch
          %186 = sbr.rel (%p184) target = $region32
        $region31: #{tpu_custom_call.1} parent=27 // pred_region
          %187 = dma.done %s180, 128
        $region32: #{tpu_custom_call.1} parent=27 // pred_fallthru
          _
        %s188 = sand.u32 %s72, 1
        %s189 = scalar_lea.sflag [#allocation8], %s188
        %s190 = sand.u32 %s72, 1
        %s191 = smul.addr %s190, 8
        %s192 = scalar_lea.vmem [#allocation7], %s191
        // Predicated region
        $region33: #{tpu_custom_call.1} parent=27 // pred_check
          %p193 = pneg %p85
        $region34: #{tpu_custom_call.1} parent=27 // pred_check_branch
          %195 = sbr.rel (%p193) target = $region36
        $region35: #{tpu_custom_call.1} parent=27 // pred_region
          %196 = dma.done %s189, 128
        $region36: #{tpu_custom_call.1} parent=27 // pred_fallthru
          _
        %s197 = sand.u32 %s44, 1
        %s198 = scalar_lea.sflag [#allocation5], %s197
        %s199 = sand.u32 %s44, 1
        %s200 = smul.addr %s199, 8
        %s201 = scalar_lea.vmem [#allocation4], %s200
        %p202 = pneg %p57
        %p203 = pneg %p54
        %s204 = sand.u32 %s72, 1
        %s205 = scalar_lea.sflag [#allocation8], %s204
        %s206 = sand.u32 %s72, 1
        %s207 = smul.addr %s206, 8
        %s208 = scalar_lea.vmem [#allocation7], %s207
        %p209 = pneg %p85
        %p210 = pneg %p82
        %p211 = pneg %p111
        %p212 = pneg %p108
        %s213 = sand.u32 %s98, 1
        %s214 = scalar_lea.sflag [#allocation6], %s213
        %s215 = sand.u32 %s98, 1
        %s216 = smul.addr %s215, 2
        %s217 = scalar_lea.vmem [#allocation9], %s216
        %s218 = smul.u32 2, %s27
        %s219 = smul.u32 2, %s27
        %p220 = scmp.eq.s32.totalorder %s27, 0
        // Predicated region
        $region37: #{tpu_custom_call.1} parent=27 // pred_check
          %p221 = pneg %p220
        $region38: #{tpu_custom_call.1} parent=27 // pred_check_branch
          %223 = sbr.rel (%p221) target = $region40
        $region39: #{tpu_custom_call.1} parent=27 // pred_region
          %224 = vst [vmem:[#allocation2] sm:$0xff] 0.0
          %225 = vst [vmem:[#allocation3] sm:$0xff] 0.0
        $region40: #{tpu_custom_call.1} parent=27 // pred_fallthru
          _
        %v226 = vld [vmem:[%s183] sm:$0xff]
        %v227 = vld [vmem:[%s192] sm:$0xff]
        %v228 = vsub.f32 %v226, %v227
        %v229 = vand.u32 2147483647, %v228
        %v230 = vrsqrt.pop %v229
        %v231 = vmul.f32 %v229, %v230
        %vm232 = vcmp.eq.f32.partialorder %v229, inf
        %v233 = vsel %vm232, %v229, %v231
        %vm234 = vcmp.eq.f32.partialorder %v229, 0.0
        %v235 = vand.u32 %v229, 2147483648
        %v236 = vsel %vm234, %v235, %v233
        %v237 = vmul.f32 %v229, %v236
        %v238 = vadd.f32 %v226, %v227
        %v239 = vld [vmem:[#allocation2] sm:$0xff]
        %v240 = vadd.f32 %v239, %v237
        %241 = vst [vmem:[#allocation2] sm:$0xff] %v240
        %v242 = vld [vmem:[#allocation3] sm:$0xff]
        %v243 = vadd.f32 %v242, %v238
        %244 = vst [vmem:[#allocation3] sm:$0xff] %v243
        // Predicated region
        $region41: #{tpu_custom_call.1} parent=27 // pred_check
          %p245 = pneg %p220
        $region42: #{tpu_custom_call.1} parent=27 // pred_check_branch
          %247 = sbr.rel (%p245) target = $region44
        $region43: #{tpu_custom_call.1} parent=27 // pred_region
          %v248 = vld [vmem:[#allocation2] sm:$0xff]
          %v250 = vcombine.high %v248, %v248
          %vm252 = vcmask 1043456
          %v253 = vsel %vm252, %v248, 0.0
          %v254 = vsel %vm252, %v250, 0.0
          %v255 = vadd.f32 %v253, %v254
          %256 = vadd.xlane.f32.xlu0 %v255
          %v257 = vpop.xlane.xlu0 %256
          %v259 = vlaneseq
          %v260 = vand.u32 %v259, 127
          %v261 = vlaneseq
          %v262 = vshrl.u32 %v261, 7
          %v263 = vsub.s32 %v260, %v262
          %v264 = vrot.slane %v257, %v263
          %vm266 = vcmask 24576
          %267 = vst.msk [vmem:[%s217] sm:$0x1] %vm266, %v264
          %v268 = vld [vmem:[#allocation3] sm:$0xff]
          %v270 = vcombine.high %v268, %v268
          %v272 = vsel %vm252, %v268, 0.0
          %v273 = vsel %vm252, %v270, 0.0
          %v274 = vadd.f32 %v272, %v273
          %275 = vadd.xlane.f32.xlu0 %v274
          %v276 = vpop.xlane.xlu0 %275
          %v278 = vlaneseq
          %v279 = vshrl.u32 %v278, 7
          %v280 = vsub.s32 %v260, %v279
          %v281 = vrot.slane %v276, %v280
          %283 = vst.msk [vmem:[%s217 + $0x1] sm:$0x1] %vm266, %v281
        $region44: #{tpu_custom_call.1} parent=27 // pred_fallthru
          _
        %s284 = sand.u32 %s98, 1
        %s285 = scalar_lea.sflag [#allocation6], %s284
        %s286 = sand.u32 %s98, 1
        %s287 = smul.addr %s286, 2
        %s288 = scalar_lea.vmem [#allocation9], %s287
        // Predicated region
        $region45: #{tpu_custom_call.1} parent=27 // pred_check
          %p289 = pneg %p108
        $region46: #{tpu_custom_call.1} parent=27 // pred_check_branch
          %291 = sbr.rel (%p289) target = $region48
        $region47: #{tpu_custom_call.1} parent=27 // pred_region
          %s293 = ssub.s32 32, 32
          %294 = vsyncadd %s285, %s293
          %s295 = smul.addr %s26, 32
          %s296 = scalar_lea.hbm %s2, %s295
          %s298 = sshll.u32 %s288, 4
          %s299 = int_to_ptr.vmem [resolvable:$true] %s298
          %301 = dma.vmem_to_hbm [thread:$0]  %s299, 32, %s296, %s285
        $region48: #{tpu_custom_call.1} parent=27 // pred_fallthru
          _
      $region28: #{tpu_custom_call.1} parent=5 // pred_fallthru
        _
      %p302 = scmp.le.s32.totalorder 2, %s17
      // Predicated region
      $region49: #{tpu_custom_call.1} parent=5 // pred_check
        %p303 = pneg %p302
      $region50: #{tpu_custom_call.1} parent=5 // pred_check_branch
        %305 = sbr.rel (%p303) target = $region52
      $region51: #{tpu_custom_call.1} parent=5 // pred_region
        %s306 = ssub.s32 %s17, 2
        // Predicated region
        $region53: #{tpu_custom_call.1} parent=51 // pred_check
          %p307 = pneg %p114
        $region54: #{tpu_custom_call.1} parent=51 // pred_check_branch
          %309 = sbr.rel (%p307) target = $region56
        $region55: #{tpu_custom_call.1} parent=51 // pred_region
          %s310 = sand.u32 %s99, 1
          %s311 = scalar_lea.sflag [#allocation6], %s310
          %s312 = sand.u32 %s99, 1
          %s313 = smul.addr %s312, 2
          %s314 = scalar_lea.vmem [#allocation9], %s313
          %315 = dma.done %s311, 32
        $region56: #{tpu_custom_call.1} parent=51 // pred_fallthru
          _
      $region52: #{tpu_custom_call.1} parent=5 // pred_fallthru
        _
    $region6: #{tpu_custom_call.1} parent=1 // loop_footer
      %s21 = sadd.s32 1, %s17
    $region7: #{tpu_custom_call.1} parent=1 // loop_footer_branch
      %16 = sbr.rel target = $region3
    $region8: #{tpu_custom_call.1} parent=1 // loop_exit
      _
    %316 = vsyncpa [#allocation5], 1
    %s317 = scalar_lea.sflag [#allocation5], 1
    %318 = vsyncpa %s317, 1
    %319 = vsyncpa [#allocation8], 1
    %s320 = scalar_lea.sflag [#allocation8], 1
    %321 = vsyncpa %s320, 1
    %322 = vsyncpa [#allocation6], 1
    %s323 = scalar_lea.sflag [#allocation6], 1
    %324 = vsyncpa %s323, 1

</llo_original>
